<compile_context>
chip_gen: v5e
topology: v5e:2x2
jax: 0.10.0
libtpu: 0.0.40
codegen_flags: <defaults>
</compile_context>

<pallas_src>
import functools

import jax
import jax.numpy as jnp
from jax import lax
from jax.experimental import pallas as pl
from jax.experimental.pallas import tpu as pltpu


def _round_up(x, m):
    return ((x + m - 1) // m) * m


def center_loss_kernel(labels_ref, x_ref, c_ref, out_ref, acc_ref, *,
                       batch_size, num_classes, tile_b):
    # labels_ref: (TB, 1) int32 tile of labels.
    # x_ref:      (TB, D) tile of features.
    # c_ref:      (C, D) full centers table, resident in VMEM.
    # out_ref:    (1, 1) f32 output, written once in the finalize branch.
    # acc_ref:    (1, 1) f32 VMEM scratch accumulator across batch tiles.
    i = pl.program_id(0)

    @pl.when(i == 0)
    def _init():
        acc_ref[...] = jnp.zeros_like(acc_ref)

    x = x_ref[...].astype(jnp.float32)          # (TB, D)
    centers = c_ref[...].astype(jnp.float32)    # (C, D)
    labels = labels_ref[...]                    # (TB, 1) int32

    # Gather centers[labels] via a one-hot matmul on the MXU.
    class_ids = lax.broadcasted_iota(jnp.int32, (tile_b, num_classes), 1)
    onehot = (labels == class_ids).astype(jnp.float32)                       # (TB, C)
    gathered = jnp.dot(onehot, centers, preferred_element_type=jnp.float32)  # (TB, D)

    diff = x - gathered
    d = jnp.sum(diff * diff, axis=-1, keepdims=True)     # (TB, 1) per-sample dist^2
    d = jnp.clip(d, 1e-12, 1e12)                         # per-sample clamp (torch semantics)

    # Zero out padded rows (global row index >= batch_size).
    row = i * tile_b + lax.broadcasted_iota(jnp.int32, (tile_b, 1), 0)
    valid = (row < batch_size).astype(jnp.float32)

    acc_ref[...] += jnp.sum(d * valid, axis=0, keepdims=True)   # (1, 1)

    @pl.when(i == pl.num_programs(0) - 1)
    def _finalize():
        # torch clamps the whole masked (B, C) matrix, so the B*(C-1)
        # masked-out zeros each contribute 1e-12 before dividing by B.
        masked_zeros = jnp.float32(batch_size * (num_classes - 1) * 1e-12)
        out_ref[...] = (acc_ref[...] + masked_zeros) * jnp.float32(1.0 / batch_size)


def center_loss(x, centers, labels, *, max_tile_b=512):
    """x: (B, D) float, centers: (C, D) float, labels: (B,) int -> scalar f32."""
    B, D = x.shape
    C, _ = centers.shape

    # Batch tile: sublane-aligned, as large as is sensible; one step for small B.
    tile_b = min(max_tile_b, _round_up(B, 8))
    b_pad = _round_up(B, tile_b)
    num_tiles = b_pad // tile_b

    if b_pad != B:
        x = jnp.pad(x, ((0, b_pad - B), (0, 0)))
        labels = jnp.pad(labels, (0, b_pad - B))
    labels2d = labels.astype(jnp.int32).reshape(b_pad, 1)

    kernel = functools.partial(
        center_loss_kernel, batch_size=B, num_classes=C, tile_b=tile_b)

    grid_spec = pltpu.PrefetchScalarGridSpec(
        num_scalar_prefetch=0,
        grid=(num_tiles,),
        in_specs=[
            # Labels tile for this batch chunk.
            pl.BlockSpec((tile_b, 1), lambda i: (i, 0)),
            # Feature tile for this batch chunk.
            pl.BlockSpec((tile_b, D), lambda i: (i, 0)),
            # Full centers table, resident across the whole grid.
            pl.BlockSpec((C, D), lambda i: (0, 0)),
        ],
        out_specs=pl.BlockSpec((1, 1), lambda i: (0, 0)),
        scratch_shapes=[pltpu.VMEM((1, 1), jnp.float32)],
    )

    itemsize = jnp.dtype(x.dtype).itemsize
    cost = pl.CostEstimate(
        flops=2 * b_pad * C * D + 3 * b_pad * D,
        transcendentals=0,
        bytes_accessed=(b_pad * D + C * D) * itemsize + b_pad * 4 + 4,
    )

    out = pl.pallas_call(
        kernel,
        out_shape=jax.ShapeDtypeStruct((1, 1), jnp.float32),
        grid_spec=grid_spec,
        compiler_params=pltpu.CompilerParams(
            # Batch-tile axis is a reduction into the resident accumulator.
            dimension_semantics=("arbitrary",)),
        cost_estimate=cost,
    )(labels2d, x, centers)
    return out[0, 0]


if __name__ == "__main__":
    # Small, deterministic shapes consistent with the module's forward:
    # batch=8, feat_dim=32, num_classes=10.
    B, D, C = 8, 32, 10
    key = jax.random.PRNGKey(0)
    kx, kc, kl = jax.random.split(key, 3)

    x = jax.random.normal(kx, (B, D), dtype=jnp.float32)
    # nn.Parameter(torch.randn(num_classes, feat_dim)) -> deterministic normal init.
    centers = jax.random.normal(kc, (C, D), dtype=jnp.float32)
    labels = jax.random.randint(kl, (B,), 0, C, dtype=jnp.int32)

    loss = center_loss(x, centers, labels)
    jax.block_until_ready(loss)

    # Pure-JAX reference with the exact PyTorch semantics (full masked distmat,
    # clamped entry-wise including the masked-out zeros).
    x_sq = jnp.sum(x * x, axis=1, keepdims=True)
    c_sq = jnp.sum(centers * centers, axis=1, keepdims=True)
    distmat = x_sq + c_sq.T - 2.0 * (x @ centers.T)
    mask = (labels[:, None] == jnp.arange(C)[None, :]).astype(jnp.float32)
    ref = jnp.sum(jnp.clip(distmat * mask, 1e-12, 1e12)) / B

    assert jnp.allclose(loss, ref, rtol=1e-5, atol=1e-5), (loss, ref)
    print("KERNEL_OK")
</pallas_src>

<mosaic_0001>
module attributes {stable_mosaic.version = 11 : i64} {
  func.func @center_loss_kernel(%arg0: i32, %arg1: memref<8x1xi32, #tpu.memory_space<vmem>>, %arg2: memref<8x32xf32, #tpu.memory_space<vmem>>, %arg3: memref<10x32xf32, #tpu.memory_space<vmem>>, %arg4: memref<1x1xf32, #tpu.memory_space<vmem>>, %arg5: memref<1x1xf32, #tpu.memory_space<vmem>>) attributes {dimension_semantics = [#tpu.dimension_semantics<arbitrary>], iteration_bounds = array<i64: 1>, scalar_prefetch = 0 : i64, scratch_operands = 1 : i64, tpu.core_type = #tpu.core_type<tc>, window_params = [{transform_indices = @transform_0, window_bounds = array<i64: 8, 1>}, {transform_indices = @transform_1, window_bounds = array<i64: 8, 32>}, {pipeline_mode = #tpu.pipeline_mode<synchronous>, transform_indices = @transform_2, window_bounds = array<i64: 10, 32>}, {pipeline_mode = #tpu.pipeline_mode<synchronous>, transform_indices = @transform_3, window_bounds = array<i64: 1, 1>}]} {
    %c0_i32 = arith.constant 0 : i32
    %0 = arith.cmpi eq, %arg0, %c0_i32 : i32
    %1 = arith.extui %0 : i1 to i32
    %c0_i32_0 = arith.constant 0 : i32
    %2 = arith.cmpi ne, %1, %c0_i32_0 : i32
    scf.if %2 {
      %cst_17 = arith.constant 0.000000e+00 : f32
      %37 = vector.broadcast %cst_17 : f32 to vector<1x1xf32>
      %c0_18 = arith.constant 0 : index
      %c0_19 = arith.constant 0 : index
      %38 = vector.load %arg5[%c0_18, %c0_19] : memref<1x1xf32, #tpu.memory_space<vmem>>, vector<1x1xf32>
      tpu.vector_store %arg5[%c0_18, %c0_19], %37 {strides = array<i32>} : memref<1x1xf32, #tpu.memory_space<vmem>>, vector<1x1xf32>,
    } else {
    }
    %c0 = arith.constant 0 : index
    %c0_1 = arith.constant 0 : index
    %3 = vector.load %arg2[%c0, %c0_1] : memref<8x32xf32, #tpu.memory_space<vmem>>, vector<8x32xf32>
    %c0_2 = arith.constant 0 : index
    %c0_3 = arith.constant 0 : index
    %4 = vector.load %arg3[%c0_2, %c0_3] : memref<10x32xf32, #tpu.memory_space<vmem>>, vector<10x32xf32>
    %c0_4 = arith.constant 0 : index
    %c0_5 = arith.constant 0 : index
    %5 = vector.load %arg1[%c0_4, %c0_5] : memref<8x1xi32, #tpu.memory_space<vmem>>, vector<8x1xi32>
    %6 = tpu.iota {dimensions = array<i32: 1>} : vector<8x10xi32>
    %7 = vector.broadcast %5 : vector<8x1xi32> to vector<8x10xi32>
    %8 = arith.cmpi eq, %7, %6 : vector<8x10xi32>
    %9 = arith.extui %8 : vector<8x10xi1> to vector<8x10xi32>
    %10 = arith.sitofp %9 : vector<8x10xi32> to vector<8x10xf32>
    %cst = arith.constant dense<0.000000e+00> : vector<8x32xf32>
    %11 = tpu.matmul %10, %4, %cst {dimension_numbers = #tpu.dot_dimension_numbers<[1], [0], [0], [1], [0, 0, 1, 1], [], []>} : vector<8x10xf32>, vector<10x32xf32>, vector<8x32xf32> -> vector<8x32xf32>
    %12 = arith.subf %3, %11 : vector<8x32xf32>
    %13 = arith.mulf %12, %12 : vector<8x32xf32>
    %cst_6 = arith.constant dense<0.000000e+00> : vector<8xf32>
    %14 = vector.multi_reduction <add>, %13, %cst_6 [1] : vector<8x32xf32> to vector<8xf32>
    %15 = vector.shape_cast %14 : vector<8xf32> to vector<8x1xf32>
    %cst_7 = arith.constant 9.99999996E-13 : f32
    %cst_8 = arith.constant 9.99999995E+11 : f32
    %16 = vector.broadcast %cst_7 : f32 to vector<8x1xf32>
    %17 = arith.maximumf %16, %15 : vector<8x1xf32>
    %18 = vector.broadcast %cst_8 : f32 to vector<8x1xf32>
    %19 = arith.minimumf %18, %17 : vector<8x1xf32>
    %c8_i32 = arith.constant 8 : i32
    %20 = arith.muli %arg0, %c8_i32 : i32
    %21 = tpu.iota {dimensions = array<i32: 0>} : vector<8x1xi32>
    %22 = vector.broadcast %20 : i32 to vector<8x1xi32>
    %23 = arith.addi %22, %21 : vector<8x1xi32>
    %c8_i32_9 = arith.constant 8 : i32
    %24 = vector.broadcast %c8_i32_9 : i32 to vector<8x1xi32>
    %25 = arith.cmpi slt, %23, %24 : vector<8x1xi32>
    %26 = arith.extui %25 : vector<8x1xi1> to vector<8x1xi32>
    %27 = arith.sitofp %26 : vector<8x1xi32> to vector<8x1xf32>
    %c0_10 = arith.constant 0 : index
    %c0_11 = arith.constant 0 : index
    %28 = vector.load %arg5[%c0_10, %c0_11] : memref<1x1xf32, #tpu.memory_space<vmem>>, vector<1x1xf32>
    %29 = arith.mulf %19, %27 : vector<8x1xf32>
    %cst_12 = arith.constant dense<0.000000e+00> : vector<1xf32>
    %30 = vector.multi_reduction <add>, %29, %cst_12 [0] : vector<8x1xf32> to vector<1xf32>
    %31 = vector.shape_cast %30 : vector<1xf32> to vector<1x1xf32>
    %32 = arith.addf %28, %31 : vector<1x1xf32>
    %c0_13 = arith.constant 0 : index
    %c0_14 = arith.constant 0 : index
    %33 = vector.load %arg5[%c0_13, %c0_14] : memref<1x1xf32, #tpu.memory_space<vmem>>, vector<1x1xf32>
    tpu.vector_store %arg5[%c0_13, %c0_14], %32 {strides = array<i32>} : memref<1x1xf32, #tpu.memory_space<vmem>>, vector<1x1xf32>,
    %c0_i32_15 = arith.constant 0 : i32
    %34 = arith.cmpi eq, %arg0, %c0_i32_15 : i32
    %35 = arith.extui %34 : i1 to i32
    %c0_i32_16 = arith.constant 0 : i32
    %36 = arith.cmpi ne, %35, %c0_i32_16 : i32
    scf.if %36 {
      %c0_17 = arith.constant 0 : index
      %c0_18 = arith.constant 0 : index
      %37 = vector.load %arg5[%c0_17, %c0_18] : memref<1x1xf32, #tpu.memory_space<vmem>>, vector<1x1xf32>
      %cst_19 = arith.constant 7.200000e-11 : f32
      %38 = vector.broadcast %cst_19 : f32 to vector<1x1xf32>
      %39 = arith.addf %37, %38 : vector<1x1xf32>
      %cst_20 = arith.constant 1.250000e-01 : f32
      %40 = vector.broadcast %cst_20 : f32 to vector<1x1xf32>
      %41 = arith.mulf %39, %40 : vector<1x1xf32>
      %c0_21 = arith.constant 0 : index
      %c0_22 = arith.constant 0 : index
      %42 = vector.load %arg4[%c0_21, %c0_22] : memref<1x1xf32, #tpu.memory_space<vmem>>, vector<1x1xf32>
      tpu.vector_store %arg4[%c0_21, %c0_22], %41 {strides = array<i32>} : memref<1x1xf32, #tpu.memory_space<vmem>>, vector<1x1xf32>,
    } else {
    }
    return
  }
  func.func @transform_0(%arg0: i32) -> (i32, i32) {
    %c0_i32 = arith.constant 0 : i32
    %c0_i32_0 = arith.constant 0 : i32
    return %arg0, %c0_i32 : i32, i32
  }
  func.func @transform_1(%arg0: i32) -> (i32, i32) {
    %c0_i32 = arith.constant 0 : i32
    %c0_i32_0 = arith.constant 0 : i32
    return %arg0, %c0_i32 : i32, i32
  }
  func.func @transform_2(%arg0: i32) -> (i32, i32) {
    %c0_i32 = arith.constant 0 : i32
    %c0_i32_0 = arith.constant 0 : i32
    %c0_i32_1 = arith.constant 0 : i32
    return %c0_i32, %c0_i32_0 : i32, i32
  }
  func.func @transform_3(%arg0: i32) -> (i32, i32) {
    %c0_i32 = arith.constant 0 : i32
    %c0_i32_0 = arith.constant 0 : i32
    %c0_i32_1 = arith.constant 0 : i32
    return %c0_i32, %c0_i32_0 : i32, i32
  }
}

</mosaic_0001>

<llo_original>
// kernel: tpu_custom_call.1
$region0: #{tpu_custom_call.1}
  #allocation0 [shape = 'u32[]', space=smem, size = 0x4, offset = 0x4, fixed_abs, tag = 'smem constant byte address 0x4 - core index']
  #allocation1 [shape = 'u32[72,128]{1,0:T(1,128)}', space=vmem, size = 0x9000, scoped, tag = 'internal scratch']
  #allocation2 [shape = 'f32[1,1]{1,0:T(1,128)}', space=vmem, size = 0x200, scoped, tag = 'scratch operand']
  %s0 = inlined_call_operand.vmem [shape: s32[8,1], index: 0, kind: input, shape index: {}]
  %s1 = inlined_call_operand.vmem [shape: f32[8,32], index: 1, kind: input, shape index: {}]
  %s2 = inlined_call_operand.hbm [shape: f32[10,32], index: 2, kind: input, shape index: {}]
  %s3 = inlined_call_operand.hbm [shape: f32[1,1], index: 3, kind: output, shape index: {}]
  %s4 = sld [smem:[#allocation0]]
  $region34: #{tpu_custom_call.1} parent=0
    _
  %s6 = ssub.s32 1, %s4
  %s7 = scalar_select 0, %s6, %s4
  $region1: #{tpu_custom_call.1} parent=0
    #allocation3 [shape = 'u8[8192]{0}', space=vmem, size = 0x2000, scoped, tag = 'input window, operand 2, single buffered']
    #allocation4 [shape = 's32[1]{0}', space=sflag, size = 0x4, scoped, tag = 'scoped memory for tpu_custom_call.1']
    #allocation5 [shape = 's32[1]{0}', space=sflag, size = 0x4, scoped, tag = 'scoped memory for tpu_custom_call.1']
    #allocation6 [shape = 'u8[512]{0}', space=vmem, size = 0x400, scoped, tag = 'output window, operand 0, single buffered']
    %8 = vsyncpa [#allocation4], 0
    %9 = vsyncpa [#allocation5], 0
    // Predicated region
    $region2: #{tpu_custom_call.1} parent=1 // pred_check
      _
    $region3: #{tpu_custom_call.1} parent=1 // pred_check_branch
      %11 = sbr.rel (0) target = $region5
    $region4: #{tpu_custom_call.1} parent=1 // pred_region
      _
    $region5: #{tpu_custom_call.1} parent=1 // pred_fallthru
      _
    // Predicated region
    $region6: #{tpu_custom_call.1} parent=1 // pred_check
      _
    $region7: #{tpu_custom_call.1} parent=1 // pred_check_branch
      %13 = sbr.rel (0) target = $region9
    $region8: #{tpu_custom_call.1} parent=1 // pred_region
      _
    $region9: #{tpu_custom_call.1} parent=1 // pred_fallthru
      _
    // Predicated region
    $region10: #{tpu_custom_call.1} parent=1 // pred_check
      _
    $region11: #{tpu_custom_call.1} parent=1 // pred_check_branch
      %15 = sbr.rel (0) target = $region13
    $region12: #{tpu_custom_call.1} parent=1 // pred_region
      %17 = vsyncadd [#allocation4], 0
      %s18 = sshll.u32 %s2, 4
      %s19 = int_to_ptr.hbm [resolvable:$true] %s18
      %s20 = sshll.u32 [#allocation3], 4
      %s21 = int_to_ptr.vmem [resolvable:$true] %s20
      %26 = dma.hbm_to_vmem [thread:$0]  %s19, 256, %s21, [#allocation4], 128, 128, 8
    $region13: #{tpu_custom_call.1} parent=1 // pred_fallthru
      _
    // Predicated region
    $region14: #{tpu_custom_call.1} parent=1 // pred_check
      _
    $region15: #{tpu_custom_call.1} parent=1 // pred_check_branch
      %28 = sbr.rel (0) target = $region17
    $region16: #{tpu_custom_call.1} parent=1 // pred_region
      %30 = dma.done [#allocation4], 256
    $region17: #{tpu_custom_call.1} parent=1 // pred_fallthru
      _
    %p31 = scmp.eq.s32.totalorder 0, 0
    // Predicated region
    $region18: #{tpu_custom_call.1} parent=1 // pred_check
      %p32 = pneg %p31
    $region19: #{tpu_custom_call.1} parent=1 // pred_check_branch
      %34 = sbr.rel (%p32) target = $region21
    $region20: #{tpu_custom_call.1} parent=1 // pred_region
      %vm35 = vcmask 0
      %36 = vst.msk [vmem:[#allocation2] sm:$0x1] %vm35, 0.0
    $region21: #{tpu_custom_call.1} parent=1 // pred_fallthru
      _
    %v37 = vld [vmem:[%s1] sm:$0xff]
    %v38 = vld [vmem:[#allocation3] sm:$0xff]
    %v39 = vld [vmem:[#allocation3 + $0x8] sm:$0x3]
    %v40 = vld [vmem:[%s0] sm:$0xff]
    %v41 = vlaneseq
    %v42 = vand.u32 %v41, 127
    %43 = vset.pattern.permute.xlu0 0
    %44 = vperm.xlu0 %43, %v40
    %v45 = vpop.permute.xlu0 %44
    %vm46 = vcmp.eq.s32.totalorder %v45, %v42
    %v47 = vsel %vm46, 1, 0
    %v48 = vcvt.s32.f32 %v47
    %vm49 = vcmask 80896
    %v51 = vsel %vm49, %v48, 0
    %vm53 = vcmask 1041408
    %v55 = vsel %vm53, %v39, 0
    %57 = vmatpush.msra.mxu0 0.0
    %58 = vmatpush.msra.mxu0 0.0
    %59 = vmatpush.msra.mxu0 0.0
    %60 = vmatpush.msra.mxu0 0.0
    %61 = vmatpush.msra.mxu0 0.0
    %62 = vmatpush.msra.mxu0 0.0
    %63 = vmatpush.msra.mxu0 0.0
    %64 = vmatpush.msra.mxu0 0.0
    %65 = vmatpush.msra.mxu0 0.0
    %66 = vmatpush.msra.mxu0 0.0
    %67 = vmatpush.msra.mxu0 0.0
    %68 = vmatpush.msra.mxu0 0.0
    %69 = vmatpush.msra.mxu0 0.0
    %70 = vmatpush.msra.mxu0 0.0
    %71 = vmatpush.msra.mxu0 %v55
    %72 = vmatpush.msra.mxu0 %v38
    %73 = vmatmul.f32.gmra.mxu0 %v51
    %v74 = vpop.f32.mrf.mxu0
    %v75 = vadd.f32 0.0, %v74
    %76 = vdwg.mxu0
    %v77 = vsub.f32 %v37, %v75
    %v78 = vmul.f32 %v77, %v77
    %vm79 = vcmask 261120
    %v80 = vsel %vm79, %v78, 0.0
    %81 = vadd.xlane.f32.xlu0 %v80
    %v82 = vpop.xlane.xlu0 %81
    %v83 = vmax.f32 %v82, 1e-12
    %v84 = vmin.f32 %v83, 1e+12
    %s85 = smul.u32 0, 8
    %v86 = vlaneseq
    %v87 = vshrl.u32 %v86, 7
    %v88 = vstv %s85
    %v89 = vadd.s32 %v88, %v87
    %vm90 = vcmp.lt.s32.totalorder %v89, 8
    %v91 = vsel %vm90, 1, 0
    %v92 = vcvt.s32.f32 %v91
    %v93 = vld [vmem:[#allocation2] sm:$0x1]
    %v94 = vmul.f32 %v84, %v92
    %v95 = vrot.slane %v94, 4
    %v96 = vadd.f32 %v94, %v95
    %v97 = vrot.slane %v96, 2
    %v98 = vadd.f32 %v96, %v97
    %v99 = vrot.slane %v98, 1
    %v100 = vadd.f32 %v98, %v99
    %v101 = vadd.f32 %v93, %v100
    %vm102 = vcmask 0
    %103 = vst.msk [vmem:[#allocation2] sm:$0x1] %vm102, %v101
    // Predicated region
    $region22: #{tpu_custom_call.1} parent=1 // pred_check
      %p104 = pneg %p31
    $region23: #{tpu_custom_call.1} parent=1 // pred_check_branch
      %106 = sbr.rel (%p104) target = $region25
    $region24: #{tpu_custom_call.1} parent=1 // pred_region
      %v107 = vld [vmem:[#allocation2] sm:$0x1]
      %v108 = vadd.f32 %v107, 7.2e-11
      %v109 = vmul.f32 %v108, 0.125
      %110 = vst.msk [vmem:[#allocation6] sm:$0x1] %vm102, %v109
    $region25: #{tpu_custom_call.1} parent=1 // pred_fallthru
      _
    // Predicated region
    $region26: #{tpu_custom_call.1} parent=1 // pred_check
      _
    $region27: #{tpu_custom_call.1} parent=1 // pred_check_branch
      %112 = sbr.rel (0) target = $region29
    $region28: #{tpu_custom_call.1} parent=1 // pred_region
      %114 = vsyncadd [#allocation5], 0
      %s116 = sshll.u32 [#allocation6], 4
      %s117 = int_to_ptr.vmem [resolvable:$true] %s116
      %s118 = sshll.u32 %s3, 4
      %s119 = int_to_ptr.hbm [resolvable:$true] %s118
      %121 = dma.vmem_to_hbm [thread:$0]  %s117, 16, %s119, [#allocation5]
    $region29: #{tpu_custom_call.1} parent=1 // pred_fallthru
      _
    // Predicated region
    $region30: #{tpu_custom_call.1} parent=1 // pred_check
      _
    $region31: #{tpu_custom_call.1} parent=1 // pred_check_branch
      %123 = sbr.rel (0) target = $region33
    $region32: #{tpu_custom_call.1} parent=1 // pred_region
      %125 = dma.done [#allocation5], 16
    $region33: #{tpu_custom_call.1} parent=1 // pred_fallthru
      _
    %126 = vsyncpa [#allocation4], 1
    %127 = vsyncpa [#allocation5], 1

</llo_original>
